<compile_context>
chip_gen: v5e
topology: v5e:2x2
jax: 0.10.0
libtpu: 0.0.40
codegen_flags: <defaults>
</compile_context>

<pallas_src>
import jax
import jax.numpy as jnp
from jax.experimental import pallas as pl
from jax.experimental.pallas import tpu as pltpu


def _patch_embed_kernel(p_ref, w_ref, pos_ref, o_ref):
    # p_ref  : (1, ts, K) padded patch rows (compute dtype); seq row 0 is zero
    # w_ref  : (K, E)     projection weight (resident, constant index map)
    # pos_ref: (ts, E)    f32 add table: row 0 = cls+pos[0], rows>0 = pos+bias
    # o_ref  : (1, ts, E) output rows
    acc = jnp.dot(p_ref[0], w_ref[...],
                  preferred_element_type=jnp.float32)          # MXU, f32 accum
    o_ref[0] = (acc + pos_ref[...]).astype(o_ref.dtype)        # f32 VALU add


def _pick_seq_tile(S, target=256):
    """Seq rows per grid step: full extent if small (always legal), otherwise a
    fixed multiple-of-8 tile with a masked last partial block (cdiv grid)."""
    if S <= target:
        return S
    return (target // 8) * 8


def patch_embedding(x, weight, bias, cls_token, positions, patch_size,
                    *, compute_dtype=jnp.bfloat16, ts_target=256):
    """x: [B, C, H, W] (NCHW).  Returns [B, N+1, E] in x.dtype."""
    B, C, H, W = x.shape
    P = patch_size
    Hp, Wp = H // P, W // P
    N = Hp * Wp
    S = N + 1
    E = weight.shape[0]
    K = C * P * P
    out_dtype = x.dtype

    if compute_dtype is None:
        compute_dtype = x.dtype

    # Cast BEFORE the materializing im2col transpose (halves that HBM copy and
    # the per-step patch DMA for bf16).
    xc = x.astype(compute_dtype)
    w_mat = weight.astype(compute_dtype).reshape(E, K).T        # (K, E)

    # --- glue: im2col.  (c, i, j) flatten order matches Conv2d weight [E,C,P,P].
    patches = xc.reshape(B, C, Hp, P, Wp, P)
    patches = patches.transpose(0, 2, 4, 1, 3, 5)               # [B, Hp, Wp, C, P, P]
    patches = patches.reshape(B, N, K)
    # One zero row per batch at seq position 0 (cls slot); under jit XLA fuses
    # this pad into the im2col copy, so it is not an extra HBM round trip.
    patches = jnp.pad(patches, ((0, 0), (1, 0), (0, 0)))        # (B, S, K)

    # (S, E) f32 add table shared across the batch:
    #   row 0      = cls_token + positions[0]          (zero patch row @ W == 0)
    #   rows 1..N  = positions[1:] + conv bias
    cls_row = (cls_token.reshape(1, E).astype(jnp.float32)
               + positions[0:1, :].astype(jnp.float32))
    rest = (positions[1:, :].astype(jnp.float32)
            + bias.astype(jnp.float32)[None, :])
    pos_full = jnp.concatenate([cls_row, rest], axis=0)         # (S, E)

    ts = _pick_seq_tile(S, ts_target)
    grid = (B, pl.cdiv(S, ts))

    return pl.pallas_call(
        _patch_embed_kernel,
        out_shape=jax.ShapeDtypeStruct((B, S, E), out_dtype),
        grid_spec=pltpu.PrefetchScalarGridSpec(
            num_scalar_prefetch=0,
            grid=grid,
            in_specs=[
                pl.BlockSpec((1, ts, K), lambda b, j: (b, j, 0)),   # patch rows
                pl.BlockSpec((K, E), lambda b, j: (0, 0)),          # weight (resident)
                pl.BlockSpec((ts, E), lambda b, j: (j, 0)),         # pos table (batch-independent)
            ],
            out_specs=pl.BlockSpec((1, ts, E), lambda b, j: (b, j, 0)),
        ),
        compiler_params=pltpu.CompilerParams(
            dimension_semantics=("parallel", "parallel")),
    )(patches, w_mat, pos_full)


def _reference(x, weight, bias, cls_token, positions, patch_size):
    """Plain-JAX reference mirroring the PyTorch forward."""
    B, C, H, W = x.shape
    P = patch_size
    E = weight.shape[0]
    y = jax.lax.conv_general_dilated(
        x, weight, window_strides=(P, P), padding="VALID",
        dimension_numbers=("NCHW", "OIHW", "NCHW"))             # [B, E, Hp, Wp]
    y = y + bias.reshape(1, E, 1, 1)
    B_, E_, Hp, Wp = y.shape
    y = y.transpose(0, 2, 3, 1).reshape(B_, Hp * Wp, E_)        # b e h w -> b (h w) e
    cls = jnp.broadcast_to(cls_token.reshape(1, 1, E), (B_, 1, E))
    y = jnp.concatenate([cls, y], axis=1)
    return y + positions[None, :, :]


if __name__ == "__main__":
    # Small shapes consistent with the module (scaled down from the ViT default).
    B, C, IMG, P, E = 2, 4, 16, 8, 128
    N = (IMG // P) ** 2                                         # 4 patches -> seq 5

    key = jax.random.PRNGKey(0)
    k_x, k_w, k_b, k_cls, k_pos = jax.random.split(key, 5)
    x = jax.random.normal(k_x, (B, C, IMG, IMG), jnp.float32)
    weight = jax.random.normal(k_w, (E, C, P, P), jnp.float32) * 0.02
    bias = jax.random.normal(k_b, (E,), jnp.float32) * 0.02
    cls_token = jax.random.normal(k_cls, (1, 1, E), jnp.float32)
    positions = jax.random.normal(k_pos, (N + 1, E), jnp.float32)

    ref = _reference(x, weight, bias, cls_token, positions, P)

    pe = jax.jit(patch_embedding,
                 static_argnames=("patch_size", "compute_dtype", "ts_target"))

    # f32 compute path (tight tolerance).
    out_f32 = jax.block_until_ready(
        pe(x, weight, bias, cls_token, positions, patch_size=P,
           compute_dtype=jnp.float32))
    assert out_f32.shape == (B, N + 1, E)
    assert jnp.allclose(out_f32, ref, atol=1e-4, rtol=1e-4)

    # bf16 default compute path (f32 accumulation, f32 pos/bias add).
    out_bf16 = jax.block_until_ready(
        pe(x, weight, bias, cls_token, positions, patch_size=P))
    assert out_bf16.shape == (B, N + 1, E)
    assert jnp.allclose(out_bf16, ref, atol=3e-2, rtol=5e-2)

    print("KERNEL_OK")
</pallas_src>

<mosaic_0001>
module attributes {stable_mosaic.version = 11 : i64} {
  func.func @_patch_embed_kernel(%arg0: i32, %arg1: i32, %arg2: memref<1x5x256xf32, #tpu.memory_space<vmem>>, %arg3: memref<256x128xf32, #tpu.memory_space<vmem>>, %arg4: memref<5x128xf32, #tpu.memory_space<vmem>>, %arg5: memref<1x5x128xf32, #tpu.memory_space<vmem>>) attributes {dimension_semantics = [#tpu.dimension_semantics<parallel>, #tpu.dimension_semantics<parallel>], iteration_bounds = array<i64: 2, 1>, scalar_prefetch = 0 : i64, scratch_operands = 0 : i64, tpu.core_type = #tpu.core_type<tc>, window_params = [{transform_indices = @transform_0, window_bounds = array<i64: 1, 5, 256>}, {pipeline_mode = #tpu.pipeline_mode<synchronous>, transform_indices = @transform_1, window_bounds = array<i64: 256, 128>}, {transform_indices = @transform_2, window_bounds = array<i64: 5, 128>}, {transform_indices = @transform_3, window_bounds = array<i64: 1, 5, 128>}]} {
    %c0 = arith.constant 0 : index
    %c0_0 = arith.constant 0 : index
    %c0_1 = arith.constant 0 : index
    %0 = vector.load %arg2[%c0, %c0_0, %c0_1] : memref<1x5x256xf32, #tpu.memory_space<vmem>>, vector<1x5x256xf32>
    %1 = vector.shape_cast %0 : vector<1x5x256xf32> to vector<5x256xf32>
    %c0_2 = arith.constant 0 : index
    %c0_3 = arith.constant 0 : index
    %2 = vector.load %arg3[%c0_2, %c0_3] : memref<256x128xf32, #tpu.memory_space<vmem>>, vector<256x128xf32>
    %cst = arith.constant dense<0.000000e+00> : vector<5x128xf32>
    %3 = tpu.matmul %1, %2, %cst {dimension_numbers = #tpu.dot_dimension_numbers<[1], [0], [0], [1], [0, 0, 1, 1], [], []>} : vector<5x256xf32>, vector<256x128xf32>, vector<5x128xf32> -> vector<5x128xf32>
    %c0_4 = arith.constant 0 : index
    %c0_5 = arith.constant 0 : index
    %4 = vector.load %arg4[%c0_4, %c0_5] : memref<5x128xf32, #tpu.memory_space<vmem>>, vector<5x128xf32>
    %5 = arith.addf %3, %4 : vector<5x128xf32>
    %c0_6 = arith.constant 0 : index
    %c0_7 = arith.constant 0 : index
    %c0_8 = arith.constant 0 : index
    %6 = vector.load %arg5[%c0_6, %c0_7, %c0_8] : memref<1x5x128xf32, #tpu.memory_space<vmem>>, vector<1x5x128xf32>
    %7 = vector.shape_cast %6 : vector<1x5x128xf32> to vector<5x128xf32>
    %8 = vector.shape_cast %5 : vector<5x128xf32> to vector<1x5x128xf32>
    tpu.vector_store %arg5[%c0_6, %c0_7, %c0_8], %8 {strides = array<i32>} : memref<1x5x128xf32, #tpu.memory_space<vmem>>, vector<1x5x128xf32>,
    return
  }
  func.func @transform_0(%arg0: i32, %arg1: i32) -> (i32, i32, i32) {
    %c0_i32 = arith.constant 0 : i32
    %c0_i32_0 = arith.constant 0 : i32
    return %arg0, %arg1, %c0_i32 : i32, i32, i32
  }
  func.func @transform_1(%arg0: i32, %arg1: i32) -> (i32, i32) {
    %c0_i32 = arith.constant 0 : i32
    %c0_i32_0 = arith.constant 0 : i32
    %c0_i32_1 = arith.constant 0 : i32
    return %c0_i32, %c0_i32_0 : i32, i32
  }
  func.func @transform_2(%arg0: i32, %arg1: i32) -> (i32, i32) {
    %c0_i32 = arith.constant 0 : i32
    %c0_i32_0 = arith.constant 0 : i32
    return %arg1, %c0_i32 : i32, i32
  }
  func.func @transform_3(%arg0: i32, %arg1: i32) -> (i32, i32, i32) {
    %c0_i32 = arith.constant 0 : i32
    %c0_i32_0 = arith.constant 0 : i32
    return %arg0, %arg1, %c0_i32 : i32, i32, i32
  }
}

</mosaic_0001>

<llo_original>
// kernel: patch_embedding.1
$region0: #{patch_embedding.1}
  #allocation0 [shape = 'u32[]', space=smem, size = 0x4, offset = 0x4, fixed_abs, tag = 'smem constant byte address 0x4 - core index']
  #allocation1 [shape = 'u32[72,128]{1,0:T(1,128)}', space=vmem, size = 0x9000, scoped, tag = 'internal scratch']
  %s0 = inlined_call_operand.vmem [shape: f32[2,5,256], index: 0, kind: input, shape index: {}]
  %s1 = inlined_call_operand.vmem [shape: f32[256,128], index: 1, kind: input, shape index: {}]
  %s2 = inlined_call_operand.vmem [shape: f32[5,128], index: 2, kind: input, shape index: {}]
  %s3 = inlined_call_operand.vmem [shape: f32[2,5,128], index: 3, kind: output, shape index: {}]
  %s4 = sld [smem:[#allocation0]]
  $region45: #{patch_embedding.1} parent=0
    _
  %s6 = ssub.s32 1, %s4
  %s7 = scalar_select 0, %s6, %s4
  loop: start=0, step=1, limit=4
  $region2: #{patch_embedding.1} parent=0 // loop_pre_header
    _
  $region3: #{patch_embedding.1} parent=0 // loop_header
    %s9 = sphi 0, %s13
    %p10 = scmp.ge.s32.totalorder %s9, 4
    %s16 = sphi 0, %s28
    %s17 = sphi 0, %s24
    %s18 = sphi 0, %s16
    %s19 = sphi 0, %s17
    %s20 = sphi 0, %s18
    %s21 = sphi 0, %s19
    %s33 = sphi 0, %s35
    %s36 = sphi 0, %s33
    %s37 = sphi 0, %s36
    %s53 = sphi 0, %s37
    %s57 = sphi 0, %s57
    %s59 = sphi 0, %s57
    %s60 = sphi 0, %s59
    %s74 = sphi 0, %s60
    %s80 = sphi 0, %s82
    %s83 = sphi 0, %s80
    %s84 = sphi 0, %s83
    %s100 = sphi 0, %s84
    %s108 = sphi 0, %s110
    %s111 = sphi 0, %s108
    %s112 = sphi 0, %s111
    %s128 = sphi 0, %s112
  $region4: #{patch_embedding.1} parent=0 // loop_header_branch
    %12 = sbr.rel (%p10) target = $region8
  $region5: #{patch_embedding.1} parent=0 // loop_body
    %s14 = ssub.s32 %s9, 1
    %s15 = ssub.s32 %s9, 2
    %s22 = sadd.s32 1, %s17
    %p23 = scmp.ge.s32.totalorder %s22, 1
    %s24 = scalar_select %p23, 0, %s22
    %s25 = sadd.s32 1, %s16
    %s26 = scalar_select %p23, %s25, %s16
    %p27 = scmp.ge.s32.totalorder %s26, 2
    %s28 = scalar_select %p27, 0, %s26
    %s29 = ssub.s32 %s16, %s28
    %s30 = ssub.s32 %s17, %s24
    %s31 = sor.u32 %s29, %s30
    %p32 = scmp.eq.s32.totalorder %s31, 0
    %s34 = sadd.s32 %s33, 1
    %s35 = scalar_select %p32, %s33, %s34
    %p38 = pneg %p32
    %p39 = scmp.eq.s32.totalorder %s9, 1
    %p40 = por %p38, %p39
    %p41 = scmp.ne.s32.totalorder %s33, %s36
    %p42 = scmp.eq.s32.totalorder %s9, 0
    %p43 = por %p41, %p42
    %p44 = scmp.ne.s32.totalorder %s33, %s36
    %p45 = scmp.eq.s32.totalorder %s14, 1
    %p46 = por %p44, %p45
    %p47 = scmp.ne.s32.totalorder %s36, %s37
    %p48 = scmp.eq.s32.totalorder %s14, 0
    %p49 = por %p47, %p48
    %p50 = scmp.ne.s32.totalorder %s36, %s37
    %p51 = scmp.eq.s32.totalorder %s15, 1
    %p52 = por %p50, %p51
    %p54 = scmp.ne.s32.totalorder %s37, %s53
    %p55 = scmp.eq.s32.totalorder %s15, 0
    %p56 = por %p54, %p55
    %s58 = sadd.s32 %s57, 1
    %p61 = scmp.eq.s32.totalorder %s9, 1
    %p62 = scmp.ne.s32.totalorder %s57, %s59
    %p63 = scmp.eq.s32.totalorder %s9, 0
    %p64 = por %p62, %p63
    %p65 = scmp.ne.s32.totalorder %s57, %s59
    %p66 = scmp.eq.s32.totalorder %s14, 1
    %p67 = por %p65, %p66
    %p68 = scmp.ne.s32.totalorder %s59, %s60
    %p69 = scmp.eq.s32.totalorder %s14, 0
    %p70 = por %p68, %p69
    %p71 = scmp.ne.s32.totalorder %s59, %s60
    %p72 = scmp.eq.s32.totalorder %s15, 1
    %p73 = por %p71, %p72
    %p75 = scmp.ne.s32.totalorder %s60, %s74
    %p76 = scmp.eq.s32.totalorder %s15, 0
    %p77 = por %p75, %p76
    %s78 = ssub.s32 %s17, %s24
    %p79 = scmp.eq.s32.totalorder %s78, 0
    %s81 = sadd.s32 %s80, 1
    %s82 = scalar_select %p79, %s80, %s81
    %p85 = pneg %p79
    %p86 = scmp.eq.s32.totalorder %s9, 1
    %p87 = por %p85, %p86
    %p88 = scmp.ne.s32.totalorder %s80, %s83
    %p89 = scmp.eq.s32.totalorder %s9, 0
    %p90 = por %p88, %p89
    %p91 = scmp.ne.s32.totalorder %s80, %s83
    %p92 = scmp.eq.s32.totalorder %s14, 1
    %p93 = por %p91, %p92
    %p94 = scmp.ne.s32.totalorder %s83, %s84
    %p95 = scmp.eq.s32.totalorder %s14, 0
    %p96 = por %p94, %p95
    %p97 = scmp.ne.s32.totalorder %s83, %s84
    %p98 = scmp.eq.s32.totalorder %s15, 1
    %p99 = por %p97, %p98
    %p101 = scmp.ne.s32.totalorder %s84, %s100
    %p102 = scmp.eq.s32.totalorder %s15, 0
    %p103 = por %p101, %p102
    %s104 = ssub.s32 %s16, %s28
    %s105 = ssub.s32 %s17, %s24
    %s106 = sor.u32 %s104, %s105
    %p107 = scmp.eq.s32.totalorder %s106, 0
    %s109 = sadd.s32 %s108, 1
    %s110 = scalar_select %p107, %s108, %s109
    %p113 = pneg %p107
    %p114 = scmp.eq.s32.totalorder %s9, 1
    %p115 = por %p113, %p114
    %p116 = scmp.ne.s32.totalorder %s108, %s111
    %p117 = scmp.eq.s32.totalorder %s9, 0
    %p118 = por %p116, %p117
    %p119 = scmp.ne.s32.totalorder %s108, %s111
    %p120 = scmp.eq.s32.totalorder %s14, 1
    %p121 = por %p119, %p120
    %p122 = scmp.ne.s32.totalorder %s111, %s112
    %p123 = scmp.eq.s32.totalorder %s14, 0
    %p124 = por %p122, %p123
    %p125 = scmp.ne.s32.totalorder %s111, %s112
    %p126 = scmp.eq.s32.totalorder %s15, 1
    %p127 = por %p125, %p126
    %p129 = scmp.ne.s32.totalorder %s112, %s128
    %p130 = scmp.eq.s32.totalorder %s15, 0
    %p131 = por %p129, %p130
    %p132 = scmp.le.s32.totalorder 1, %s9
    %p133 = scmp.lt.s32.totalorder %s9, 3
    %p134 = pnand %p132, %p133
    %p135 = pneg %p134
    // Predicated region
    $region9: #{patch_embedding.1} parent=5 // pred_check
      _
    $region10: #{patch_embedding.1} parent=5 // pred_check_branch
      %137 = sbr.rel (%p134) target = $region12
    $region11: #{patch_embedding.1} parent=5 // pred_region
      %s138 = ssub.s32 %s9, 1
      // Predicated region
      $region13: #{patch_embedding.1} parent=11 // pred_check
        %p139 = pneg %p70
      $region14: #{patch_embedding.1} parent=11 // pred_check_branch
        %141 = sbr.rel (%p139) target = $region16
      $region15: #{patch_embedding.1} parent=11 // pred_region
        _
      $region16: #{patch_embedding.1} parent=11 // pred_fallthru
        _
      // Predicated region
      $region17: #{patch_embedding.1} parent=11 // pred_check
        %p142 = pneg %p96
      $region18: #{patch_embedding.1} parent=11 // pred_check_branch
        %144 = sbr.rel (%p142) target = $region20
      $region19: #{patch_embedding.1} parent=11 // pred_region
        %p145 = scmp.lt.s32.totalorder %s19, 0
        %s146 = scalar_select %p145, %s19, 0
        %s147 = smul.addr %s146, 8
        %s148 = scalar_lea.vmem %s2, %s147
      $region20: #{patch_embedding.1} parent=11 // pred_fallthru
        _
    $region12: #{patch_embedding.1} parent=5 // pred_fallthru
      _
    %p149 = scmp.lt.s32.totalorder %s9, 2
    // Predicated region
    $region21: #{patch_embedding.1} parent=5 // pred_check
      %p150 = pneg %p149
    $region22: #{patch_embedding.1} parent=5 // pred_check_branch
      %152 = sbr.rel (%p150) target = $region24
    $region23: #{patch_embedding.1} parent=5 // pred_region
      // Predicated region
      $region25: #{patch_embedding.1} parent=23 // pred_check
        %p153 = pneg %p43
      $region26: #{patch_embedding.1} parent=23 // pred_check_branch
        %155 = sbr.rel (%p153) target = $region28
      $region27: #{patch_embedding.1} parent=23 // pred_region
        %p156 = scmp.lt.s32.totalorder %s16, 1
        %s157 = scalar_select %p156, %s16, 1
        %p158 = scmp.lt.s32.totalorder %s17, 0
        %s159 = scalar_select %p158, %s17, 0
        %s160 = smul.addr %s159, 2
        %s161 = smul.addr %s157, 2
        %s162 = sadd.s32 %s160, %s161
        %s163 = smul.addr %s162, 8
        %s164 = scalar_lea.vmem %s0, %s163
      $region28: #{patch_embedding.1} parent=23 // pred_fallthru
        _
    $region24: #{patch_embedding.1} parent=5 // pred_fallthru
      _
    %p165 = scmp.le.s32.totalorder 1, %s9
    %p166 = scmp.lt.s32.totalorder %s9, 3
    %p167 = pnand %p165, %p166
    %p168 = pneg %p167
    // Predicated region
    $region29: #{patch_embedding.1} parent=5 // pred_check
      _
    $region30: #{patch_embedding.1} parent=5 // pred_check_branch
      %170 = sbr.rel (%p167) target = $region32
    $region31: #{patch_embedding.1} parent=5 // pred_region
      %s171 = ssub.s32 %s9, 1
      %p172 = scmp.lt.s32.totalorder %s18, 1
      %s173 = scalar_select %p172, %s18, 1
      %p174 = scmp.lt.s32.totalorder %s19, 0
      %s175 = scalar_select %p174, %s19, 0
      %s176 = smul.addr %s175, 2
      %s177 = smul.addr %s173, 2
      %s178 = sadd.s32 %s176, %s177
      %s179 = smul.addr %s178, 8
      %s180 = scalar_lea.vmem %s0, %s179
      %p181 = pneg %p49
      %p182 = pneg %p46
      %p183 = pneg %p70
      %p184 = pneg %p67
      %p185 = scmp.lt.s32.totalorder %s19, 0
      %s186 = scalar_select %p185, %s19, 0
      %s187 = smul.addr %s186, 8
      %s188 = scalar_lea.vmem %s2, %s187
      %p189 = pneg %p96
      %p190 = pneg %p93
      %p191 = pneg %p124
      %p192 = pneg %p121
      %p193 = scmp.lt.s32.totalorder %s18, 1
      %s194 = scalar_select %p193, %s18, 1
      %p195 = scmp.lt.s32.totalorder %s19, 0
      %s196 = scalar_select %p195, %s19, 0
      %s197 = sadd.s32 %s196, %s194
      %s198 = smul.addr %s197, 8
      %s199 = scalar_lea.vmem %s3, %s198
      %p200 = scmp.lt.s32.totalorder %s18, 1
      %s201 = scalar_select %p200, %s18, 1
      %p202 = scmp.lt.s32.totalorder %s19, 0
      %s203 = scalar_select %p202, %s19, 0
      %s204 = smul.addr %s203, 2
      %s205 = smul.addr %s201, 2
      %s206 = sadd.s32 %s204, %s205
      %s207 = smul.addr %s206, 8
      %s208 = scalar_lea.vmem %s0, %s207
      %p209 = scmp.lt.s32.totalorder %s19, 0
      %s210 = scalar_select %p209, %s19, 0
      %s211 = smul.addr %s210, 8
      %s212 = scalar_lea.vmem %s2, %s211
      %p213 = scmp.lt.s32.totalorder %s18, 1
      %s214 = scalar_select %p213, %s18, 1
      %p215 = scmp.lt.s32.totalorder %s19, 0
      %s216 = scalar_select %p215, %s19, 0
      %s217 = sadd.s32 %s216, %s214
      %s218 = smul.addr %s217, 8
      %s219 = scalar_lea.vmem %s3, %s218
      %v220 = vld [vmem:[%s208] sm:$0x1f]
      %v221 = vld [vmem:[%s208 + $0x8] sm:$0x1f]
      %v222 = vld [vmem:[%s1] sm:$0xff]
      %v223 = vld [vmem:[%s1 + $0x8] sm:$0xff]
      %v224 = vld [vmem:[%s1 + $0x10] sm:$0xff]
      %v225 = vld [vmem:[%s1 + $0x18] sm:$0xff]
      %v226 = vld [vmem:[%s1 + $0x20] sm:$0xff]
      %v227 = vld [vmem:[%s1 + $0x28] sm:$0xff]
      %v228 = vld [vmem:[%s1 + $0x30] sm:$0xff]
      %v229 = vld [vmem:[%s1 + $0x38] sm:$0xff]
      %v230 = vld [vmem:[%s1 + $0x40] sm:$0xff]
      %v231 = vld [vmem:[%s1 + $0x48] sm:$0xff]
      %v232 = vld [vmem:[%s1 + $0x50] sm:$0xff]
      %v233 = vld [vmem:[%s1 + $0x58] sm:$0xff]
      %v234 = vld [vmem:[%s1 + $0x60] sm:$0xff]
      %v235 = vld [vmem:[%s1 + $0x68] sm:$0xff]
      %v236 = vld [vmem:[%s1 + $0x70] sm:$0xff]
      %v237 = vld [vmem:[%s1 + $0x78] sm:$0xff]
      %v238 = vld [vmem:[%s1 + $0x80] sm:$0xff]
      %v239 = vld [vmem:[%s1 + $0x88] sm:$0xff]
      %v240 = vld [vmem:[%s1 + $0x90] sm:$0xff]
      %v241 = vld [vmem:[%s1 + $0x98] sm:$0xff]
      %v242 = vld [vmem:[%s1 + $0xa0] sm:$0xff]
      %v243 = vld [vmem:[%s1 + $0xa8] sm:$0xff]
      %v244 = vld [vmem:[%s1 + $0xb0] sm:$0xff]
      %v245 = vld [vmem:[%s1 + $0xb8] sm:$0xff]
      %v246 = vld [vmem:[%s1 + $0xc0] sm:$0xff]
      %v247 = vld [vmem:[%s1 + $0xc8] sm:$0xff]
      %v248 = vld [vmem:[%s1 + $0xd0] sm:$0xff]
      %v249 = vld [vmem:[%s1 + $0xd8] sm:$0xff]
      %v250 = vld [vmem:[%s1 + $0xe0] sm:$0xff]
      %v251 = vld [vmem:[%s1 + $0xe8] sm:$0xff]
      %v252 = vld [vmem:[%s1 + $0xf0] sm:$0xff]
      %v253 = vld [vmem:[%s1 + $0xf8] sm:$0xff]
      %v254 = vld [vmem:[%s212] sm:$0x1f]
      %255 = vmatpush.msra.mxu0 %v237
      %256 = vmatpush.msra.mxu0 %v236
      %257 = vmatpush.msra.mxu0 %v235
      %258 = vmatpush.msra.mxu0 %v234
      %259 = vmatpush.msra.mxu0 %v233
      %260 = vmatpush.msra.mxu0 %v232
      %261 = vmatpush.msra.mxu0 %v231
      %262 = vmatpush.msra.mxu0 %v230
      %263 = vmatpush.msra.mxu0 %v229
      %264 = vmatpush.msra.mxu0 %v228
      %265 = vmatpush.msra.mxu0 %v227
      %266 = vmatpush.msra.mxu0 %v226
      %267 = vmatpush.msra.mxu0 %v225
      %268 = vmatpush.msra.mxu0 %v224
      %269 = vmatpush.msra.mxu0 %v223
      %270 = vmatpush.msra.mxu0 %v222
      %271 = vmatmul.f32.gmra.mxu0 %v220
      %v272 = vpop.f32.mrf.mxu0
      %v273 = vadd.f32 %v254, %v272
      %274 = vdwg.mxu0
      %275 = vmatpush.msra.mxu0 %v253
      %276 = vmatpush.msra.mxu0 %v252
      %277 = vmatpush.msra.mxu0 %v251
      %278 = vmatpush.msra.mxu0 %v250
      %279 = vmatpush.msra.mxu0 %v249
      %280 = vmatpush.msra.mxu0 %v248
      %281 = vmatpush.msra.mxu0 %v247
      %282 = vmatpush.msra.mxu0 %v246
      %283 = vmatpush.msra.mxu0 %v245
      %284 = vmatpush.msra.mxu0 %v244
      %285 = vmatpush.msra.mxu0 %v243
      %286 = vmatpush.msra.mxu0 %v242
      %287 = vmatpush.msra.mxu0 %v241
      %288 = vmatpush.msra.mxu0 %v240
      %289 = vmatpush.msra.mxu0 %v239
      %290 = vmatpush.msra.mxu0 %v238
      %291 = vmatmul.f32.gmra.mxu0 %v221
      %v292 = vpop.f32.mrf.mxu0
      %v293 = vadd.f32 %v273, %v292
      %294 = vdwg.mxu0
      %295 = vst [vmem:[%s219] sm:$0x1f] %v293
      %p296 = scmp.lt.s32.totalorder %s18, 1
      %s297 = scalar_select %p296, %s18, 1
      %p298 = scmp.lt.s32.totalorder %s19, 0
      %s299 = scalar_select %p298, %s19, 0
      %s300 = sadd.s32 %s299, %s297
      %s301 = smul.addr %s300, 8
      %s302 = scalar_lea.vmem %s3, %s301
      // Predicated region
      $region33: #{patch_embedding.1} parent=31 // pred_check
        %p303 = pneg %p121
      $region34: #{patch_embedding.1} parent=31 // pred_check_branch
        %305 = sbr.rel (%p303) target = $region36
      $region35: #{patch_embedding.1} parent=31 // pred_region
        _
      $region36: #{patch_embedding.1} parent=31 // pred_fallthru
        _
    $region32: #{patch_embedding.1} parent=5 // pred_fallthru
      _
    %p306 = scmp.le.s32.totalorder 2, %s9
    // Predicated region
    $region37: #{patch_embedding.1} parent=5 // pred_check
      %p307 = pneg %p306
    $region38: #{patch_embedding.1} parent=5 // pred_check_branch
      %309 = sbr.rel (%p307) target = $region40
    $region39: #{patch_embedding.1} parent=5 // pred_region
      %s310 = ssub.s32 %s9, 2
      // Predicated region
      $region41: #{patch_embedding.1} parent=39 // pred_check
        %p311 = pneg %p127
      $region42: #{patch_embedding.1} parent=39 // pred_check_branch
        %313 = sbr.rel (%p311) target = $region44
      $region43: #{patch_embedding.1} parent=39 // pred_region
        %p314 = scmp.lt.s32.totalorder %s20, 1
        %s315 = scalar_select %p314, %s20, 1
        %p316 = scmp.lt.s32.totalorder %s21, 0
        %s317 = scalar_select %p316, %s21, 0
        %s318 = sadd.s32 %s317, %s315
        %s319 = smul.addr %s318, 8
        %s320 = scalar_lea.vmem %s3, %s319
      $region44: #{patch_embedding.1} parent=39 // pred_fallthru
        _
    $region40: #{patch_embedding.1} parent=5 // pred_fallthru
      _
  $region6: #{patch_embedding.1} parent=0 // loop_footer
    %s13 = sadd.s32 1, %s9
  $region7: #{patch_embedding.1} parent=0 // loop_footer_branch
    %8 = sbr.rel target = $region3
  $region8: #{patch_embedding.1} parent=0 // loop_exit
    _

</llo_original>
